<compile_context>
chip_gen: v7x
topology: tpu7x:2x2x1
jax: 0.10.0
libtpu: 0.0.40
codegen_flags: <defaults>
</compile_context>

<pallas_src>
import functools

import jax
import jax.numpy as jnp
from jax.experimental import pallas as pl
from jax.experimental.pallas import tpu as pltpu

STATE_DIM = 8
HIDDEN_DIM = 64
ACTION_DIM = 1
ACTION_BOUND = 3.0


def policy_net_kernel(x_ref, w1_ref, b1_ref, w2_ref, b2_ref, o_ref):
    # x_ref : (STATE_DIM, TB)          lane-dense batch tile
    # w1_ref: (HIDDEN_DIM, STATE_DIM)  torch layout, VMEM-resident
    # b1_ref: (HIDDEN_DIM, 1)
    # w2_ref: (ACTION_DIM, HIDDEN_DIM)
    # b2_ref: (ACTION_DIM, 1)
    # o_ref : (ACTION_DIM, TB)         lane-dense output tile

    # fc1 + ReLU (transposed): hT = relu(W1 @ xT + b1)  -> (HIDDEN_DIM, TB)
    h = jnp.dot(w1_ref[...], x_ref[...], preferred_element_type=jnp.float32)
    h = jnp.maximum(h + b1_ref[...], 0.0)

    # fc2 + tanh * bound (transposed, lane-dense result): yT = W2 @ hT -> (1, TB)
    y = jnp.dot(w2_ref[...], h, preferred_element_type=jnp.float32)
    o_ref[...] = (jnp.tanh(y + b2_ref[...]) * ACTION_BOUND).astype(o_ref.dtype)


def _round_up(n, m):
    return ((n + m - 1) // m) * m


@functools.partial(jax.jit, static_argnames=("tb",))
def policy_net_forward(x, w1, b1, w2, b2, *, tb=2048):
    """x: (B, STATE_DIM) f32; weights in torch layout; returns (B, ACTION_DIM) f32."""
    B = x.shape[0]
    # Batch tile: lane axis must be a multiple of 128; cap at `tb` elements per step.
    TB = min(tb, _round_up(B, 128))
    B_pad = pl.cdiv(B, TB) * TB
    grid = (B_pad // TB,)

    # Zero-pad the batch (only if needed) and transpose onto the lane axis.
    if B_pad != B:
        x = jnp.pad(x, ((0, B_pad - B), (0, 0)))
    x_t = x.T                                   # (STATE_DIM, B_pad), fuses with pad
    b1_c = b1.reshape(HIDDEN_DIM, 1)
    b2_c = b2.reshape(ACTION_DIM, 1)

    out_t = pl.pallas_call(
        policy_net_kernel,
        out_shape=jax.ShapeDtypeStruct((ACTION_DIM, B_pad), jnp.float32),
        grid_spec=pl.GridSpec(
            grid=grid,
            in_specs=[
                # batch-tiled, lane-dense input
                pl.BlockSpec((STATE_DIM, TB), lambda i: (0, i)),
                # weights / biases: constant index_map -> fetched once, stay resident
                pl.BlockSpec((HIDDEN_DIM, STATE_DIM), lambda i: (0, 0)),
                pl.BlockSpec((HIDDEN_DIM, 1), lambda i: (0, 0)),
                pl.BlockSpec((ACTION_DIM, HIDDEN_DIM), lambda i: (0, 0)),
                pl.BlockSpec((ACTION_DIM, 1), lambda i: (0, 0)),
            ],
            out_specs=pl.BlockSpec((ACTION_DIM, TB), lambda i: (0, i)),
        ),
        compiler_params=pltpu.CompilerParams(
            dimension_semantics=("parallel",),       # shards batch tiles across TCs on v7x
            vmem_limit_bytes=32 * 1024 * 1024,       # explicit, safe on v5e/v6e/v7x
        ),
    )(x_t, w1, b1_c, w2, b2_c)

    # Back to torch convention: (B, ACTION_DIM), dropping batch padding.
    # (1, B) -> (B, 1) transpose is layout-free.
    return out_t[:, :B].T


def init_params(key):
    """Deterministic init matching torch.nn.Linear's U(-1/sqrt(fan_in), 1/sqrt(fan_in)).

    Weights are kept in torch layout: W1 (hidden, state), W2 (action, hidden).
    """
    k1, k2, k3, k4 = jax.random.split(key, 4)
    bound1 = 1.0 / jnp.sqrt(STATE_DIM)
    bound2 = 1.0 / jnp.sqrt(HIDDEN_DIM)
    w1 = jax.random.uniform(k1, (HIDDEN_DIM, STATE_DIM), jnp.float32, -bound1, bound1)
    b1 = jax.random.uniform(k2, (HIDDEN_DIM,), jnp.float32, -bound1, bound1)
    w2 = jax.random.uniform(k3, (ACTION_DIM, HIDDEN_DIM), jnp.float32, -bound2, bound2)
    b2 = jax.random.uniform(k4, (ACTION_DIM,), jnp.float32, -bound2, bound2)
    return w1, b1, w2, b2


def reference_forward(x, w1, b1, w2, b2):
    h = jnp.maximum(x @ w1.T + b1, 0.0)
    return jnp.tanh(h @ w2.T + b2) * ACTION_BOUND


if __name__ == "__main__":
    key = jax.random.PRNGKey(0)
    kx, kp = jax.random.split(key)
    batch = 2
    x = jax.random.normal(kx, (batch, STATE_DIM), jnp.float32)
    w1, b1, w2, b2 = init_params(kp)

    out = policy_net_forward(x, w1, b1, w2, b2)
    out = jax.block_until_ready(out)

    ref = reference_forward(x, w1, b1, w2, b2)
    assert out.shape == (batch, ACTION_DIM), out.shape
    assert jnp.allclose(out, ref, atol=1e-5, rtol=1e-5), (out, ref)

    # Also exercise a batch that is not a multiple of the tile size.
    xb = jax.random.normal(kx, (300, STATE_DIM), jnp.float32)
    outb = jax.block_until_ready(policy_net_forward(xb, w1, b1, w2, b2))
    refb = reference_forward(xb, w1, b1, w2, b2)
    assert outb.shape == (300, ACTION_DIM), outb.shape
    assert jnp.allclose(outb, refb, atol=1e-5, rtol=1e-5)

    print("KERNEL_OK")
</pallas_src>

<mosaic_0001>
module attributes {stable_mosaic.version = 11 : i64} {
  func.func @policy_net_kernel(%arg0: i32, %arg1: memref<8x128xf32, #tpu.memory_space<vmem>>, %arg2: memref<64x8xf32, #tpu.memory_space<vmem>>, %arg3: memref<64x1xf32, #tpu.memory_space<vmem>>, %arg4: memref<1x64xf32, #tpu.memory_space<vmem>>, %arg5: memref<1x1xf32, #tpu.memory_space<vmem>>, %arg6: memref<1x128xf32, #tpu.memory_space<vmem>>) attributes {dimension_semantics = [#tpu.dimension_semantics<parallel>], iteration_bounds = array<i64: 1>, scalar_prefetch = 0 : i64, scratch_operands = 0 : i64, tpu.core_type = #tpu.core_type<tc>, window_params = [{transform_indices = @transform_0, window_bounds = array<i64: 8, 128>}, {pipeline_mode = #tpu.pipeline_mode<synchronous>, transform_indices = @transform_1, window_bounds = array<i64: 64, 8>}, {pipeline_mode = #tpu.pipeline_mode<synchronous>, transform_indices = @transform_2, window_bounds = array<i64: 64, 1>}, {pipeline_mode = #tpu.pipeline_mode<synchronous>, transform_indices = @transform_3, window_bounds = array<i64: 1, 64>}, {pipeline_mode = #tpu.pipeline_mode<synchronous>, transform_indices = @transform_4, window_bounds = array<i64: 1, 1>}, {transform_indices = @transform_5, window_bounds = array<i64: 1, 128>}]} {
    %c0 = arith.constant 0 : index
    %c0_0 = arith.constant 0 : index
    %0 = vector.load %arg2[%c0, %c0_0] : memref<64x8xf32, #tpu.memory_space<vmem>>, vector<64x8xf32>
    %c0_1 = arith.constant 0 : index
    %c0_2 = arith.constant 0 : index
    %1 = vector.load %arg1[%c0_1, %c0_2] : memref<8x128xf32, #tpu.memory_space<vmem>>, vector<8x128xf32>
    %cst = arith.constant dense<0.000000e+00> : vector<64x128xf32>
    %2 = tpu.matmul %0, %1, %cst {dimension_numbers = #tpu.dot_dimension_numbers<[1], [0], [0], [1], [0, 0, 1, 1], [], []>} : vector<64x8xf32>, vector<8x128xf32>, vector<64x128xf32> -> vector<64x128xf32>
    %c0_3 = arith.constant 0 : index
    %c0_4 = arith.constant 0 : index
    %3 = vector.load %arg3[%c0_3, %c0_4] : memref<64x1xf32, #tpu.memory_space<vmem>>, vector<64x1xf32>
    %4 = vector.broadcast %3 : vector<64x1xf32> to vector<64x128xf32>
    %5 = arith.addf %2, %4 : vector<64x128xf32>
    %cst_5 = arith.constant 0.000000e+00 : f32
    %6 = vector.broadcast %cst_5 : f32 to vector<64x128xf32>
    %7 = arith.maximumf %5, %6 : vector<64x128xf32>
    %c0_6 = arith.constant 0 : index
    %c0_7 = arith.constant 0 : index
    %8 = vector.load %arg4[%c0_6, %c0_7] : memref<1x64xf32, #tpu.memory_space<vmem>>, vector<1x64xf32>
    %cst_8 = arith.constant dense<0.000000e+00> : vector<1x128xf32>
    %9 = tpu.matmul %8, %7, %cst_8 {dimension_numbers = #tpu.dot_dimension_numbers<[1], [0], [0], [1], [0, 0, 1, 1], [], []>} : vector<1x64xf32>, vector<64x128xf32>, vector<1x128xf32> -> vector<1x128xf32>
    %c0_9 = arith.constant 0 : index
    %c0_10 = arith.constant 0 : index
    %10 = vector.load %arg5[%c0_9, %c0_10] : memref<1x1xf32, #tpu.memory_space<vmem>>, vector<1x1xf32>
    %11 = vector.broadcast %10 : vector<1x1xf32> to vector<1x128xf32>
    %12 = arith.addf %9, %11 : vector<1x128xf32>
    %13 = math.tanh %12 : vector<1x128xf32>
    %cst_11 = arith.constant 3.000000e+00 : f32
    %14 = vector.broadcast %cst_11 : f32 to vector<1x128xf32>
    %15 = arith.mulf %13, %14 : vector<1x128xf32>
    %c0_12 = arith.constant 0 : index
    %c0_13 = arith.constant 0 : index
    %16 = vector.load %arg6[%c0_12, %c0_13] : memref<1x128xf32, #tpu.memory_space<vmem>>, vector<1x128xf32>
    tpu.vector_store %arg6[%c0_12, %c0_13], %15 {strides = array<i32>} : memref<1x128xf32, #tpu.memory_space<vmem>>, vector<1x128xf32>,
    return
  }
  func.func @transform_0(%arg0: i32) -> (i32, i32) {
    %c0_i32 = arith.constant 0 : i32
    %c0_i32_0 = arith.constant 0 : i32
    return %c0_i32, %arg0 : i32, i32
  }
  func.func @transform_1(%arg0: i32) -> (i32, i32) {
    %c0_i32 = arith.constant 0 : i32
    %c0_i32_0 = arith.constant 0 : i32
    %c0_i32_1 = arith.constant 0 : i32
    return %c0_i32, %c0_i32_0 : i32, i32
  }
  func.func @transform_2(%arg0: i32) -> (i32, i32) {
    %c0_i32 = arith.constant 0 : i32
    %c0_i32_0 = arith.constant 0 : i32
    %c0_i32_1 = arith.constant 0 : i32
    return %c0_i32, %c0_i32_0 : i32, i32
  }
  func.func @transform_3(%arg0: i32) -> (i32, i32) {
    %c0_i32 = arith.constant 0 : i32
    %c0_i32_0 = arith.constant 0 : i32
    %c0_i32_1 = arith.constant 0 : i32
    return %c0_i32, %c0_i32_0 : i32, i32
  }
  func.func @transform_4(%arg0: i32) -> (i32, i32) {
    %c0_i32 = arith.constant 0 : i32
    %c0_i32_0 = arith.constant 0 : i32
    %c0_i32_1 = arith.constant 0 : i32
    return %c0_i32, %c0_i32_0 : i32, i32
  }
  func.func @transform_5(%arg0: i32) -> (i32, i32) {
    %c0_i32 = arith.constant 0 : i32
    %c0_i32_0 = arith.constant 0 : i32
    return %c0_i32, %arg0 : i32, i32
  }
}

</mosaic_0001>

<llo_original>
// kernel: policy_net_forward.1
$region0: #{policy_net_forward.1}
  #allocation0 [shape = 'u32[]', space=smem, size = 0x4, offset = 0x4, fixed_abs, tag = 'smem constant byte address 0x4 - core index']
  #allocation1 [shape = 'u32[144,128]{1,0:T(1,128)}', space=vmem, size = 0x12000, scoped, tag = 'internal scratch']
  #allocation2 [shape = 'f32[1,1]{1,0:T(1,128)S(1)}', space=vmem, size = 0x200, scoped, tag = 'scoped memory for policy_net_forward.1']
  %s0 = inlined_call_operand.vmem [shape: f32[8,128], index: 0, kind: input, shape index: {}]
  %s1 = inlined_call_operand.vmem [shape: f32[64,8], index: 1, kind: input, shape index: {}]
  %s2 = inlined_call_operand.vmem [shape: f32[64,1], index: 2, kind: input, shape index: {}]
  %s3 = inlined_call_operand.vmem [shape: f32[1,64], index: 3, kind: input, shape index: {}]
  %s4 = inlined_call_operand.<no memory space> [shape: f32[1,1], index: 4, kind: input, shape index: {}]
  %s5 = inlined_call_operand.vmem [shape: f32[1,128], index: 5, kind: output, shape index: {}]
  %s6 = sld [smem:[#allocation0]]
  $region30: #{policy_net_forward.1} parent=0
    _
  %s8 = ssub.s32 1, %s6
  %s9 = scalar_select 0, %s8, %s6
  %v10 = vstv %s4
  %11 = vst [vmem:[#allocation2] sm:$0x1] %v10
  // Predicated region
  $region2: #{policy_net_forward.1} parent=0 // pred_check
    _
  $region3: #{policy_net_forward.1} parent=0 // pred_check_branch
    %13 = sbr.rel (0) target = $region5
  $region4: #{policy_net_forward.1} parent=0 // pred_region
    _
  $region5: #{policy_net_forward.1} parent=0 // pred_fallthru
    _
  // Predicated region
  $region6: #{policy_net_forward.1} parent=0 // pred_check
    _
  $region7: #{policy_net_forward.1} parent=0 // pred_check_branch
    %15 = sbr.rel (0) target = $region9
  $region8: #{policy_net_forward.1} parent=0 // pred_region
    _
  $region9: #{policy_net_forward.1} parent=0 // pred_fallthru
    _
  // Predicated region
  $region10: #{policy_net_forward.1} parent=0 // pred_check
    _
  $region11: #{policy_net_forward.1} parent=0 // pred_check_branch
    %17 = sbr.rel (0) target = $region13
  $region12: #{policy_net_forward.1} parent=0 // pred_region
    _
  $region13: #{policy_net_forward.1} parent=0 // pred_fallthru
    _
  // Predicated region
  $region14: #{policy_net_forward.1} parent=0 // pred_check
    _
  $region15: #{policy_net_forward.1} parent=0 // pred_check_branch
    %19 = sbr.rel (0) target = $region17
  $region16: #{policy_net_forward.1} parent=0 // pred_region
    _
  $region17: #{policy_net_forward.1} parent=0 // pred_fallthru
    _
  // Predicated region
  $region18: #{policy_net_forward.1} parent=0 // pred_check
    _
  $region19: #{policy_net_forward.1} parent=0 // pred_check_branch
    %21 = sbr.rel (0) target = $region21
  $region20: #{policy_net_forward.1} parent=0 // pred_region
    _
  $region21: #{policy_net_forward.1} parent=0 // pred_fallthru
    _
  %v22 = vld [vmem:[%s1] sm:$0xff]
  %v23 = vld [vmem:[%s1 + $0x8] sm:$0xff]
  %v24 = vld [vmem:[%s1 + $0x10] sm:$0xff]
  %v25 = vld [vmem:[%s1 + $0x18] sm:$0xff]
  %v26 = vld [vmem:[%s1 + $0x20] sm:$0xff]
  %v27 = vld [vmem:[%s1 + $0x28] sm:$0xff]
  %v28 = vld [vmem:[%s1 + $0x30] sm:$0xff]
  %v29 = vld [vmem:[%s1 + $0x38] sm:$0xff]
  %v30 = vld [vmem:[%s0] sm:$0xff]
  %v31 = vld [vmem:[%s2] sm:$0xff]
  %v32 = vld [vmem:[%s2 + $0x8] sm:$0xff]
  %v33 = vld [vmem:[%s2 + $0x10] sm:$0xff]
  %v34 = vld [vmem:[%s2 + $0x18] sm:$0xff]
  %v35 = vld [vmem:[%s2 + $0x20] sm:$0xff]
  %v36 = vld [vmem:[%s2 + $0x28] sm:$0xff]
  %v37 = vld [vmem:[%s2 + $0x30] sm:$0xff]
  %v38 = vld [vmem:[%s2 + $0x38] sm:$0xff]
  %40 = vset.pattern.permute.xlu0 0
  %41 = vperm.xlu0 %40, %v31
  %v42 = vpop.permute.xlu0 %41
  %45 = vset.pattern.permute.xlu0 0
  %46 = vperm.xlu0 %45, %v32
  %v47 = vpop.permute.xlu0 %46
  %50 = vset.pattern.permute.xlu0 0
  %51 = vperm.xlu0 %50, %v33
  %v52 = vpop.permute.xlu0 %51
  %55 = vset.pattern.permute.xlu0 0
  %56 = vperm.xlu0 %55, %v34
  %v57 = vpop.permute.xlu0 %56
  %60 = vset.pattern.permute.xlu0 0
  %61 = vperm.xlu0 %60, %v35
  %v62 = vpop.permute.xlu0 %61
  %65 = vset.pattern.permute.xlu0 0
  %66 = vperm.xlu0 %65, %v36
  %v67 = vpop.permute.xlu0 %66
  %70 = vset.pattern.permute.xlu0 0
  %71 = vperm.xlu0 %70, %v37
  %v72 = vpop.permute.xlu0 %71
  %75 = vset.pattern.permute.xlu0 0
  %76 = vperm.xlu0 %75, %v38
  %v77 = vpop.permute.xlu0 %76
  %vm79 = vcmask 64512
  %v81 = vsel %vm79, %v22, 0
  %v84 = vsel %vm79, %v23, 0
  %v87 = vsel %vm79, %v24, 0
  %v90 = vsel %vm79, %v25, 0
  %v93 = vsel %vm79, %v26, 0
  %v96 = vsel %vm79, %v27, 0
  %v99 = vsel %vm79, %v28, 0
  %v102 = vsel %vm79, %v29, 0
  %104 = vmatprep.subr.mxu0 0.0
  %105 = vmatpush1.msra.mxu0 %v30
  %106 = vmatprep.subr.mxu0 0.0
  %107 = vmatpush1.msra.mxu0 0.0
  %108 = vmatprep.subr.mxu0 0.0
  %109 = vmatpush1.msra.mxu0 0.0
  %110 = vmatprep.subr.mxu0 0.0
  %111 = vmatpush1.msra.mxu0 0.0
  %112 = vmatprep.subr.mxu0 0.0
  %113 = vmatpush1.msra.mxu0 0.0
  %114 = vmatprep.subr.mxu0 0.0
  %115 = vmatpush1.msra.mxu0 0.0
  %116 = vmatprep.subr.mxu0 0.0
  %117 = vmatpush1.msra.mxu0 0.0
  %118 = vmatprep.subr.mxu0 0.0
  %119 = vmatpush1.msra.mxu0 0.0
  %120 = vmatprep.subr.mxu0 0.0
  %121 = vmatpush1.msra.mxu0 0.0
  %122 = vmatprep.subr.mxu0 0.0
  %123 = vmatpush1.msra.mxu0 0.0
  %124 = vmatprep.subr.mxu0 0.0
  %125 = vmatpush1.msra.mxu0 0.0
  %126 = vmatprep.subr.mxu0 0.0
  %127 = vmatpush1.msra.mxu0 0.0
  %128 = vmatprep.subr.mxu0 0.0
  %129 = vmatpush1.msra.mxu0 0.0
  %130 = vmatprep.subr.mxu0 0.0
  %131 = vmatpush1.msra.mxu0 0.0
  %132 = vmatprep.subr.mxu0 0.0
  %133 = vmatpush1.msra.mxu0 0.0
  %134 = vmatprep.subr.mxu0 0.0
  %135 = vmatpush1.msra.mxu0 0.0
  %136 = vmatprep.subr.mxu0 0.0
  %137 = vmatpush1.msra.mxu0 0.0
  %138 = vmatprep.subr.mxu0 0.0
  %139 = vmatpush1.msra.mxu0 0.0
  %140 = vmatprep.subr.mxu0 0.0
  %141 = vmatpush1.msra.mxu0 0.0
  %142 = vmatprep.subr.mxu0 0.0
  %143 = vmatpush1.msra.mxu0 0.0
  %144 = vmatprep.subr.mxu0 0.0
  %145 = vmatpush1.msra.mxu0 0.0
  %146 = vmatprep.subr.mxu0 0.0
  %147 = vmatpush1.msra.mxu0 0.0
  %148 = vmatprep.subr.mxu0 0.0
  %149 = vmatpush1.msra.mxu0 0.0
  %150 = vmatprep.subr.mxu0 0.0
  %151 = vmatpush1.msra.mxu0 0.0
  %152 = vmatprep.subr.mxu0 0.0
  %153 = vmatpush1.msra.mxu0 0.0
  %154 = vmatprep.subr.mxu0 0.0
  %155 = vmatpush1.msra.mxu0 0.0
  %156 = vmatprep.subr.mxu0 0.0
  %157 = vmatpush1.msra.mxu0 0.0
  %158 = vmatprep.subr.mxu0 0.0
  %159 = vmatpush1.msra.mxu0 0.0
  %160 = vmatprep.subr.mxu0 0.0
  %161 = vmatpush1.msra.mxu0 0.0
  %162 = vmatprep.subr.mxu0 0.0
  %163 = vmatpush1.msra.mxu0 0.0
  %164 = vmatprep.subr.mxu0 0.0
  %165 = vmatpush1.msra.mxu0 0.0
  %166 = vmatprep.subr.mxu0 0.0
  %167 = vmatpush1.msra.mxu0 0.0
  %168 = vmatprep.mubr.f32.mxu0 0.0
  %169 = vmatmul.mubr.f32.gmra.mrb[0].mxu0 %v81
  %v170 = vpop.f32.mrb[0].mxu0
  %v171 = vadd.f32 %v42, %v170
  %v172 = vpop.f32.mrb[0].mxu0
  %173 = vmatprep.mubr.f32.mxu0 0.0
  %174 = vmatmul.mubr.f32.gmra.mrb[0].mxu0 %v84
  %v175 = vpop.f32.mrb[0].mxu0
  %v176 = vadd.f32 %v47, %v175
  %v177 = vpop.f32.mrb[0].mxu0
  %178 = vmatprep.mubr.f32.mxu0 0.0
  %179 = vmatmul.mubr.f32.gmra.mrb[0].mxu0 %v87
  %v180 = vpop.f32.mrb[0].mxu0
  %v181 = vadd.f32 %v52, %v180
  %v182 = vpop.f32.mrb[0].mxu0
  %183 = vmatprep.mubr.f32.mxu0 0.0
  %184 = vmatmul.mubr.f32.gmra.mrb[0].mxu0 %v90
  %v185 = vpop.f32.mrb[0].mxu0
  %v186 = vadd.f32 %v57, %v185
  %v187 = vpop.f32.mrb[0].mxu0
  %188 = vmatprep.mubr.f32.mxu0 0.0
  %189 = vmatmul.mubr.f32.gmra.mrb[0].mxu0 %v93
  %v190 = vpop.f32.mrb[0].mxu0
  %v191 = vadd.f32 %v62, %v190
  %v192 = vpop.f32.mrb[0].mxu0
  %193 = vmatprep.mubr.f32.mxu0 0.0
  %194 = vmatmul.mubr.f32.gmra.mrb[0].mxu0 %v96
  %v195 = vpop.f32.mrb[0].mxu0
  %v196 = vadd.f32 %v67, %v195
  %v197 = vpop.f32.mrb[0].mxu0
  %198 = vmatprep.mubr.f32.mxu0 0.0
  %199 = vmatmul.mubr.f32.gmra.mrb[0].mxu0 %v99
  %v200 = vpop.f32.mrb[0].mxu0
  %v201 = vadd.f32 %v72, %v200
  %v202 = vpop.f32.mrb[0].mxu0
  %203 = vmatprep.mubr.f32.mxu0 0.0
  %204 = vmatmul.mubr.f32.gmra.mrb[0].mxu0 %v102
  %v205 = vpop.f32.mrb[0].mxu0
  %v206 = vadd.f32 %v77, %v205
  %v207 = vpop.f32.mrb[0].mxu0
  %208 = vdwg.mxu0
  %v209 = vmax.f32 %v171, 0.0
  %v210 = vmax.f32 %v176, 0.0
  %v211 = vmax.f32 %v181, 0.0
  %v212 = vmax.f32 %v186, 0.0
  %v213 = vmax.f32 %v191, 0.0
  %v214 = vmax.f32 %v196, 0.0
  %v215 = vmax.f32 %v201, 0.0
  %v216 = vmax.f32 %v206, 0.0
  %v217 = vld [vmem:[%s3] sm:$0x1]
  %v218 = vld [vmem:[#allocation2] sm:$0x1]
  %220 = vset.pattern.permute.xlu0 0
  %221 = vperm.xlu0 %220, %v218
  %v222 = vpop.permute.xlu0 %221
  %v224 = vlaneseq
  %v225 = vshrl.u32 %v224, 7
  %v226 = vsub.s32 0, %v225
  %v227 = vrot.slane %v222, %v226
  %vm228 = vcmask 523264
  %v230 = vsel %vm228, %v217, 0
  %232 = vmatprep.subr.mxu0 0.0
  %233 = vmatpush1.msra.mxu0 %v209
  %234 = vmatprep.subr.mxu0 0.0
  %235 = vmatpush1.msra.mxu0 %v210
  %236 = vmatprep.subr.mxu0 0.0
  %237 = vmatpush1.msra.mxu0 %v211
  %238 = vmatprep.subr.mxu0 0.0
  %239 = vmatpush1.msra.mxu0 %v212
  %240 = vmatprep.subr.mxu0 0.0
  %241 = vmatpush1.msra.mxu0 %v213
  %242 = vmatprep.subr.mxu0 0.0
  %243 = vmatpush1.msra.mxu0 %v214
  %244 = vmatprep.subr.mxu0 0.0
  %245 = vmatpush1.msra.mxu0 %v215
  %246 = vmatprep.subr.mxu0 0.0
  %247 = vmatpush1.msra.mxu0 %v216
  %248 = vmatprep.subr.mxu0 0.0
  %249 = vmatpush1.msra.mxu0 0.0
  %250 = vmatprep.subr.mxu0 0.0
  %251 = vmatpush1.msra.mxu0 0.0
  %252 = vmatprep.subr.mxu0 0.0
  %253 = vmatpush1.msra.mxu0 0.0
  %254 = vmatprep.subr.mxu0 0.0
  %255 = vmatpush1.msra.mxu0 0.0
  %256 = vmatprep.subr.mxu0 0.0
  %257 = vmatpush1.msra.mxu0 0.0
  %258 = vmatprep.subr.mxu0 0.0
  %259 = vmatpush1.msra.mxu0 0.0
  %260 = vmatprep.subr.mxu0 0.0
  %261 = vmatpush1.msra.mxu0 0.0
  %262 = vmatprep.subr.mxu0 0.0
  %263 = vmatpush1.msra.mxu0 0.0
  %264 = vmatprep.subr.mxu0 0.0
  %265 = vmatpush1.msra.mxu0 0.0
  %266 = vmatprep.subr.mxu0 0.0
  %267 = vmatpush1.msra.mxu0 0.0
  %268 = vmatprep.subr.mxu0 0.0
  %269 = vmatpush1.msra.mxu0 0.0
  %270 = vmatprep.subr.mxu0 0.0
  %271 = vmatpush1.msra.mxu0 0.0
  %272 = vmatprep.subr.mxu0 0.0
  %273 = vmatpush1.msra.mxu0 0.0
  %274 = vmatprep.subr.mxu0 0.0
  %275 = vmatpush1.msra.mxu0 0.0
  %276 = vmatprep.subr.mxu0 0.0
  %277 = vmatpush1.msra.mxu0 0.0
  %278 = vmatprep.subr.mxu0 0.0
  %279 = vmatpush1.msra.mxu0 0.0
  %280 = vmatprep.subr.mxu0 0.0
  %281 = vmatpush1.msra.mxu0 0.0
  %282 = vmatprep.subr.mxu0 0.0
  %283 = vmatpush1.msra.mxu0 0.0
  %284 = vmatprep.subr.mxu0 0.0
  %285 = vmatpush1.msra.mxu0 0.0
  %286 = vmatprep.subr.mxu0 0.0
  %287 = vmatpush1.msra.mxu0 0.0
  %288 = vmatprep.subr.mxu0 0.0
  %289 = vmatpush1.msra.mxu0 0.0
  %290 = vmatprep.subr.mxu0 0.0
  %291 = vmatpush1.msra.mxu0 0.0
  %292 = vmatprep.subr.mxu0 0.0
  %293 = vmatpush1.msra.mxu0 0.0
  %294 = vmatprep.subr.mxu0 0.0
  %295 = vmatpush1.msra.mxu0 0.0
  %296 = vmatprep.mubr.f32.mxu0 0.0
  %297 = vmatmul.mubr.f32.gmra.mrb[0].mxu0 %v230
  %v298 = vpop.f32.mrb[0].mxu0
  %v299 = vadd.f32 %v227, %v298
  %v300 = vpop.f32.mrb[0].mxu0
  %301 = vdwg.mxu0
  %v302 = vtanh.pop %v299
  %v303 = vmul.f32 %v302, 3.0
  %304 = vst [vmem:[%s5] sm:$0x1] %v303
  // Predicated region
  $region22: #{policy_net_forward.1} parent=0 // pred_check
    _
  $region23: #{policy_net_forward.1} parent=0 // pred_check_branch
    %306 = sbr.rel (0) target = $region25
  $region24: #{policy_net_forward.1} parent=0 // pred_region
    _
  $region25: #{policy_net_forward.1} parent=0 // pred_fallthru
    _
  // Predicated region
  $region26: #{policy_net_forward.1} parent=0 // pred_check
    _
  $region27: #{policy_net_forward.1} parent=0 // pred_check_branch
    %308 = sbr.rel (0) target = $region29
  $region28: #{policy_net_forward.1} parent=0 // pred_region
    _
  $region29: #{policy_net_forward.1} parent=0 // pred_fallthru
    _

</llo_original>
